<compile_context>
chip_gen: v5e
topology: v5e:2x2
jax: 0.10.0
libtpu: 0.0.40
codegen_flags: <defaults>
</compile_context>

<pallas_src>
import functools

import jax
import jax.numpy as jnp
from jax import lax
from jax.experimental import pallas as pl
from jax.experimental.pallas import tpu as pltpu


def _vicreg_kernel(i_idx_ref, j_idx_ref, xi_ref, xj_ref, yi_ref, yj_ref, o_ref,
                   *, batch_size, sim_coeff, mxu_dtype):
    t = pl.program_id(0)
    i = i_idx_ref[t]
    j = j_idx_ref[t]
    is_diag = i == j

    xi = xi_ref[...]          # (B, td_i) pre-centered, f32
    xj = xj_ref[...]          # (B, td_j)
    yi = yi_ref[...]
    yj = yj_ref[...]
    td_i = xi.shape[1]
    td_j = xj.shape[1]

    # Raw Gram tiles G_ij = xc_i^T @ xc_j on the MXU (bf16 by default, f32 acc).
    dims = (((0,), (0,)), ((), ()))
    row = lax.broadcasted_iota(jnp.int32, (td_i, td_j), 0)
    col = lax.broadcasted_iota(jnp.int32, (td_i, td_j), 1)
    # Zero the (global) diagonal only on diagonal tile pairs; strictly
    # off-diagonal tile pairs are counted twice (Gram symmetry).
    diag_mask = jnp.logical_and(is_diag, row == col)
    weight = jnp.where(is_diag, jnp.float32(1.0), jnp.float32(2.0))

    gx = lax.dot_general(xi.astype(mxu_dtype), xj.astype(mxu_dtype), dims,
                         preferred_element_type=jnp.float32)
    gx = jnp.where(diag_mask, jnp.float32(0.0), gx)
    p_cov = jnp.sum(gx * gx)
    # gy computed after gx's reduction so only one (td, td) temp is live.
    gy = lax.dot_general(yi.astype(mxu_dtype), yj.astype(mxu_dtype), dims,
                         preferred_element_type=jnp.float32)
    gy = jnp.where(diag_mask, jnp.float32(0.0), gy)
    p_cov = p_cov + jnp.sum(gy * gy)
    p_cov = p_cov * weight

    # Per-pair partials live in sublanes 0..2 (lane 0) of a lane-dense block.
    sub = lax.broadcasted_iota(jnp.int32, (8, 128), 0)
    o_ref[0] = jnp.where(sub == 2, p_cov, jnp.float32(0.0))

    @pl.when(is_diag)
    def _diag():
        # Invariance term on the centered data; the mean-difference part is
        # added back in the wrapper.
        p_mse = jnp.float32(0.0)
        if sim_coeff > 0:
            dxy = xi - yi
            p_mse = jnp.sum(dxy * dxy)
        # Per-feature sum of squares of the centered data (f32 on the VPU).
        ssx = jnp.sum(xi * xi, axis=0, keepdims=True)
        ssy = jnp.sum(yi * yi, axis=0, keepdims=True)
        inv_bm1 = jnp.float32(1.0 / (batch_size - 1))
        std_x = jnp.sqrt(ssx * inv_bm1 + 1e-4)
        std_y = jnp.sqrt(ssy * inv_bm1 + 1e-4)
        p_std = (jnp.sum(jnp.maximum(1.0 - std_x, 0.0))
                 + jnp.sum(jnp.maximum(1.0 - std_y, 0.0)))
        cur = o_ref[0]
        o_ref[0] = jnp.where(sub == 0, p_mse,
                             jnp.where(sub == 1, p_std, cur))


def _round_up(x, m):
    return (x + m - 1) // m * m


def _vmem_capacity_bytes():
    try:
        return int(pltpu.get_tpu_info().vmem_capacity_bytes)
    except Exception:
        return 64 << 20  # conservative (v7x-sized) fallback


def _vmem_need_bytes(B, td):
    blk = B * td * 4
    # 4 pipelined input streams x 2 buffers + two (td, td) f32 Gram temps + slack
    return 4 * 2 * blk + 2 * td * td * 4 + (4 << 20)


def _choose_feature_tile(D, B, budget):
    d128 = _round_up(max(D, 1), 128)
    for td in (1024, 512, 256, 128):
        if td > d128:
            continue
        if _vmem_need_bytes(B, td) <= budget:
            return td
    return 128


def vicreg_loss(x, y, *, num_features, sim_coeff, std_coeff, cov_coeff,
                mxu_dtype=jnp.bfloat16, feature_tile=None):
    assert x.shape == y.shape and x.ndim == 2
    B, D = x.shape
    assert B >= 2, "VICReg variance/covariance require batch_size >= 2"

    x32 = x.astype(jnp.float32)
    y32 = y.astype(jnp.float32)

    # Hoisted centering: per-feature means once in XLA, kernel sees centered data.
    mx = jnp.mean(x32, axis=0, keepdims=True)
    my = jnp.mean(y32, axis=0, keepdims=True)
    xc = x32 - mx
    yc = y32 - my

    vmem_cap = _vmem_capacity_bytes()
    budget = vmem_cap * 3 // 4            # headroom for compiler internal scratch
    td = feature_tile if feature_tile is not None else _choose_feature_tile(D, B, budget)
    assert td % 128 == 0, "feature tile must be a multiple of 128 lanes"

    D_pad = _round_up(D, td)
    n_pad = D_pad - D
    if n_pad:
        xc = jnp.pad(xc, ((0, 0), (0, n_pad)))
        yc = jnp.pad(yc, ((0, 0), (0, n_pad)))
    n_tiles = D_pad // td

    # 1-D grid over the upper triangle of feature-tile pairs, row-major so the
    # i-operand block index stays constant within a row (revisit-cached).
    pair_i, pair_j = [], []
    for i in range(n_tiles):
        for j in range(i, n_tiles):
            pair_i.append(i)
            pair_j.append(j)
    n_pairs = len(pair_i)
    i_idx = jnp.asarray(pair_i, dtype=jnp.int32)
    j_idx = jnp.asarray(pair_j, dtype=jnp.int32)

    kernel = functools.partial(
        _vicreg_kernel,
        batch_size=B,
        sim_coeff=float(sim_coeff),
        mxu_dtype=mxu_dtype,
    )

    vmem_bytes = int(min(budget, max(_vmem_need_bytes(B, td), 32 << 20)))

    col_i = pl.BlockSpec((B, td), lambda t, ii, jj: (0, ii[t]))
    col_j = pl.BlockSpec((B, td), lambda t, ii, jj: (0, jj[t]))

    out = pl.pallas_call(
        kernel,
        out_shape=jax.ShapeDtypeStruct((n_pairs, 8, 128), jnp.float32),
        grid_spec=pltpu.PrefetchScalarGridSpec(
            num_scalar_prefetch=2,
            grid=(n_pairs,),
            in_specs=[col_i, col_j, col_i, col_j],
            out_specs=pl.BlockSpec((1, 8, 128), lambda t, ii, jj: (t, 0, 0)),
        ),
        compiler_params=pltpu.CompilerParams(
            # Every step writes its own output block and there is no shared
            # scratch state -> safe to shard the pair axis across TensorCores.
            dimension_semantics=("parallel",),
            vmem_limit_bytes=vmem_bytes,
        ),
    )(i_idx, j_idx, xc, xc, yc, yc)

    # Finalize: tiny (n_pairs, 3) reduction + scalar normalizations in XLA.
    partial = jnp.sum(out[:, :3, 0], axis=0)
    s_mse, s_std, s_cov = partial[0], partial[1], partial[2]

    # Padded (all-zero) features contribute relu(1 - sqrt(1e-4)) to both the
    # x and y hinge sums; subtract that statically-known amount.
    std_pad = (2.0 * n_pad) * jnp.maximum(1.0 - jnp.sqrt(jnp.float32(1e-4)), 0.0)
    std_loss = (s_std - std_pad) / (2.0 * D)
    cov_loss = s_cov / (float((B - 1) * (B - 1)) * float(num_features))

    loss = std_coeff * std_loss + cov_coeff * cov_loss
    if sim_coeff > 0:
        repr_loss = s_mse / float(B * D) + jnp.mean((mx - my) ** 2)
        loss = loss + sim_coeff * repr_loss
    return loss


def vicreg_loss_ref(x, y, *, num_features, sim_coeff, std_coeff, cov_coeff):
    """Plain-JAX reference mirroring the PyTorch forward (f32, full precision)."""
    B = x.shape[0]
    repr_loss = jnp.mean((x - y) ** 2) if sim_coeff > 0 else 0.0
    xc = x - x.mean(axis=0)
    yc = y - y.mean(axis=0)
    std_x = jnp.sqrt(jnp.var(xc, axis=0, ddof=1) + 1e-4)
    std_y = jnp.sqrt(jnp.var(yc, axis=0, ddof=1) + 1e-4)
    std_loss = (jnp.mean(jax.nn.relu(1 - std_x)) / 2
                + jnp.mean(jax.nn.relu(1 - std_y)) / 2)
    hp = jax.lax.Precision.HIGHEST
    cov_x = jnp.matmul(xc.T, xc, precision=hp) / (B - 1)
    cov_y = jnp.matmul(yc.T, yc, precision=hp) / (B - 1)
    eye = jnp.eye(cov_x.shape[0], dtype=cov_x.dtype)
    cov_loss = (jnp.sum((cov_x * (1 - eye)) ** 2) / num_features
                + jnp.sum((cov_y * (1 - eye)) ** 2) / num_features)
    return sim_coeff * repr_loss + std_coeff * std_loss + cov_coeff * cov_loss


if __name__ == "__main__":
    # Standard VICReg coefficients (module "parameters").
    sim_coeff, std_coeff, cov_coeff = 25.0, 25.0, 1.0

    key = jax.random.PRNGKey(0)

    # --- Case 1: small ragged-D problem (padded to 128 lanes, grid = (1,)) ---
    B, D = 8, 32
    kx, ky, key = jax.random.split(key, 3)
    x = jax.random.normal(kx, (B, D), dtype=jnp.float32)
    y = jax.random.normal(ky, (B, D), dtype=jnp.float32)
    ref = vicreg_loss_ref(x, y, num_features=D, sim_coeff=sim_coeff,
                          std_coeff=std_coeff, cov_coeff=cov_coeff)

    loss_bf16 = jax.block_until_ready(
        vicreg_loss(x, y, num_features=D, sim_coeff=sim_coeff,
                    std_coeff=std_coeff, cov_coeff=cov_coeff))
    assert jnp.allclose(loss_bf16, ref, rtol=1e-2, atol=1e-2), (loss_bf16, ref)

    loss_f32 = jax.block_until_ready(
        vicreg_loss(x, y, num_features=D, sim_coeff=sim_coeff,
                    std_coeff=std_coeff, cov_coeff=cov_coeff,
                    mxu_dtype=jnp.float32))
    assert jnp.allclose(loss_f32, ref, rtol=1e-3, atol=1e-3), (loss_f32, ref)

    # --- Case 2: exercise the triangular pair grid (2x2 tiles -> 3 pairs) ----
    B2, D2 = 16, 256
    kx2, ky2 = jax.random.split(key)
    x2 = jax.random.normal(kx2, (B2, D2), dtype=jnp.float32)
    y2 = jax.random.normal(ky2, (B2, D2), dtype=jnp.float32)
    ref2 = vicreg_loss_ref(x2, y2, num_features=D2, sim_coeff=sim_coeff,
                           std_coeff=std_coeff, cov_coeff=cov_coeff)
    loss2 = jax.block_until_ready(
        vicreg_loss(x2, y2, num_features=D2, sim_coeff=sim_coeff,
                    std_coeff=std_coeff, cov_coeff=cov_coeff,
                    feature_tile=128))
    assert jnp.allclose(loss2, ref2, rtol=1e-2, atol=1e-2), (loss2, ref2)

    print("KERNEL_OK")
</pallas_src>

<mosaic_0001>
module attributes {stable_mosaic.version = 11 : i64} {
  func.func @_vicreg_kernel(%arg0: i32, %arg1: memref<1xi32, #tpu.memory_space<smem>>, %arg2: memref<1xi32, #tpu.memory_space<smem>>, %arg3: memref<8x128xf32, #tpu.memory_space<vmem>>, %arg4: memref<8x128xf32, #tpu.memory_space<vmem>>, %arg5: memref<8x128xf32, #tpu.memory_space<vmem>>, %arg6: memref<8x128xf32, #tpu.memory_space<vmem>>, %arg7: memref<1x8x128xf32, #tpu.memory_space<vmem>>) attributes {dimension_semantics = [#tpu.dimension_semantics<parallel>], iteration_bounds = array<i64: 1>, scalar_prefetch = 2 : i64, scratch_operands = 0 : i64, tpu.core_type = #tpu.core_type<tc>, window_params = [{transform_indices = @transform_0, window_bounds = array<i64: 8, 128>}, {transform_indices = @transform_1, window_bounds = array<i64: 8, 128>}, {transform_indices = @transform_2, window_bounds = array<i64: 8, 128>}, {transform_indices = @transform_3, window_bounds = array<i64: 8, 128>}, {transform_indices = @transform_4, window_bounds = array<i64: 1, 8, 128>}]} {
    %0 = arith.index_cast %arg0 : i32 to index
    %1 = memref.load %arg1[%0] : memref<1xi32, #tpu.memory_space<smem>>
    %2 = arith.index_cast %arg0 : i32 to index
    %3 = memref.load %arg2[%2] : memref<1xi32, #tpu.memory_space<smem>>
    %4 = arith.cmpi eq, %1, %3 : i32
    %c0 = arith.constant 0 : index
    %c0_0 = arith.constant 0 : index
    %5 = vector.load %arg3[%c0, %c0_0] : memref<8x128xf32, #tpu.memory_space<vmem>>, vector<8x128xf32>
    %c0_1 = arith.constant 0 : index
    %c0_2 = arith.constant 0 : index
    %6 = vector.load %arg4[%c0_1, %c0_2] : memref<8x128xf32, #tpu.memory_space<vmem>>, vector<8x128xf32>
    %c0_3 = arith.constant 0 : index
    %c0_4 = arith.constant 0 : index
    %7 = vector.load %arg5[%c0_3, %c0_4] : memref<8x128xf32, #tpu.memory_space<vmem>>, vector<8x128xf32>
    %c0_5 = arith.constant 0 : index
    %c0_6 = arith.constant 0 : index
    %8 = vector.load %arg6[%c0_5, %c0_6] : memref<8x128xf32, #tpu.memory_space<vmem>>, vector<8x128xf32>
    %9 = tpu.iota {dimensions = array<i32: 0>} : vector<128x128xi32>
    %10 = tpu.iota {dimensions = array<i32: 1>} : vector<128x128xi32>
    %11 = arith.cmpi eq, %9, %10 : vector<128x128xi32>
    %12 = vector.broadcast %4 : i1 to vector<128x128xi1>
    %13 = arith.andi %12, %11 : vector<128x128xi1>
    %cst = arith.constant 1.000000e+00 : f32
    %cst_7 = arith.constant 2.000000e+00 : f32
    %14 = arith.select %4, %cst, %cst_7 : f32
    %15 = arith.truncf %5 : vector<8x128xf32> to vector<8x128xbf16>
    %16 = arith.truncf %6 : vector<8x128xf32> to vector<8x128xbf16>
    %cst_8 = arith.constant dense<0.000000e+00> : vector<128x128xf32>
    %17 = tpu.matmul %15, %16, %cst_8 {dimension_numbers = #tpu.dot_dimension_numbers<[0], [0], [1], [1], [0, 1, 1, 1], [], []>} : vector<8x128xbf16>, vector<8x128xbf16>, vector<128x128xf32> -> vector<128x128xf32>
    %cst_9 = arith.constant 0.000000e+00 : f32
    %18 = vector.broadcast %cst_9 : f32 to vector<128x128xf32>
    %19 = arith.select %13, %18, %17 : vector<128x128xi1>, vector<128x128xf32>
    %20 = arith.mulf %19, %19 : vector<128x128xf32>
    %21 = vector.shape_cast %20 : vector<128x128xf32> to vector<1x128x128xf32>
    %cst_10 = arith.constant dense<0.000000e+00> : vector<1xf32>
    %22 = vector.multi_reduction <add>, %21, %cst_10 [1, 2] : vector<1x128x128xf32> to vector<1xf32>
    %23 = vector.shape_cast %22 : vector<1xf32> to vector<1x1x1xf32>
    %24 = vector.extract %23[0, 0, 0] : f32 from vector<1x1x1xf32>
    %25 = arith.truncf %7 : vector<8x128xf32> to vector<8x128xbf16>
    %26 = arith.truncf %8 : vector<8x128xf32> to vector<8x128xbf16>
    %cst_11 = arith.constant dense<0.000000e+00> : vector<128x128xf32>
    %27 = tpu.matmul %25, %26, %cst_11 {dimension_numbers = #tpu.dot_dimension_numbers<[0], [0], [1], [1], [0, 1, 1, 1], [], []>} : vector<8x128xbf16>, vector<8x128xbf16>, vector<128x128xf32> -> vector<128x128xf32>
    %cst_12 = arith.constant 0.000000e+00 : f32
    %28 = vector.broadcast %cst_12 : f32 to vector<128x128xf32>
    %29 = arith.select %13, %28, %27 : vector<128x128xi1>, vector<128x128xf32>
    %30 = arith.mulf %29, %29 : vector<128x128xf32>
    %31 = vector.shape_cast %30 : vector<128x128xf32> to vector<1x128x128xf32>
    %cst_13 = arith.constant dense<0.000000e+00> : vector<1xf32>
    %32 = vector.multi_reduction <add>, %31, %cst_13 [1, 2] : vector<1x128x128xf32> to vector<1xf32>
    %33 = vector.shape_cast %32 : vector<1xf32> to vector<1x1x1xf32>
    %34 = vector.extract %33[0, 0, 0] : f32 from vector<1x1x1xf32>
    %35 = arith.addf %24, %34 : f32
    %36 = arith.mulf %35, %14 : f32
    %37 = tpu.iota {dimensions = array<i32: 0>} : vector<8x128xi32>
    %c2_i32 = arith.constant 2 : i32
    %38 = vector.broadcast %c2_i32 : i32 to vector<8x128xi32>
    %39 = arith.cmpi eq, %37, %38 : vector<8x128xi32>
    %cst_14 = arith.constant 0.000000e+00 : f32
    %40 = vector.broadcast %36 : f32 to vector<8x128xf32>
    %41 = vector.broadcast %cst_14 : f32 to vector<8x128xf32>
    %42 = arith.select %39, %40, %41 : vector<8x128xi1>, vector<8x128xf32>
    %c0_15 = arith.constant 0 : index
    %c0_16 = arith.constant 0 : index
    %c0_17 = arith.constant 0 : index
    %43 = vector.load %arg7[%c0_15, %c0_16, %c0_17] : memref<1x8x128xf32, #tpu.memory_space<vmem>>, vector<1x8x128xf32>
    %44 = vector.shape_cast %43 : vector<1x8x128xf32> to vector<8x128xf32>
    %45 = vector.shape_cast %42 : vector<8x128xf32> to vector<1x8x128xf32>
    tpu.vector_store %arg7[%c0_15, %c0_16, %c0_17], %45 {strides = array<i32>} : memref<1x8x128xf32, #tpu.memory_space<vmem>>, vector<1x8x128xf32>,
    %46 = arith.extui %4 : i1 to i32
    %c0_i32 = arith.constant 0 : i32
    %47 = arith.cmpi ne, %46, %c0_i32 : i32
    scf.if %47 {
      %48 = arith.subf %5, %7 : vector<8x128xf32>
      %49 = arith.mulf %48, %48 : vector<8x128xf32>
      %50 = vector.shape_cast %49 : vector<8x128xf32> to vector<1x8x128xf32>
      %cst_18 = arith.constant dense<0.000000e+00> : vector<1xf32>
      %51 = vector.multi_reduction <add>, %50, %cst_18 [1, 2] : vector<1x8x128xf32> to vector<1xf32>
      %52 = vector.shape_cast %51 : vector<1xf32> to vector<1x1x1xf32>
      %53 = vector.extract %52[0, 0, 0] : f32 from vector<1x1x1xf32>
      %54 = arith.mulf %5, %5 : vector<8x128xf32>
      %cst_19 = arith.constant dense<0.000000e+00> : vector<128xf32>
      %55 = vector.multi_reduction <add>, %54, %cst_19 [0] : vector<8x128xf32> to vector<128xf32>
      %56 = vector.shape_cast %55 : vector<128xf32> to vector<1x128xf32>
      %57 = arith.mulf %7, %7 : vector<8x128xf32>
      %cst_20 = arith.constant dense<0.000000e+00> : vector<128xf32>
      %58 = vector.multi_reduction <add>, %57, %cst_20 [0] : vector<8x128xf32> to vector<128xf32>
      %59 = vector.shape_cast %58 : vector<128xf32> to vector<1x128xf32>
      %cst_21 = arith.constant 0.142857149 : f32
      %60 = vector.broadcast %cst_21 : f32 to vector<1x128xf32>
      %61 = arith.mulf %56, %60 : vector<1x128xf32>
      %cst_22 = arith.constant 9.99999974E-5 : f32
      %62 = vector.broadcast %cst_22 : f32 to vector<1x128xf32>
      %63 = arith.addf %61, %62 : vector<1x128xf32>
      %64 = math.sqrt %63 : vector<1x128xf32>
      %cst_23 = arith.constant 0.142857149 : f32
      %65 = vector.broadcast %cst_23 : f32 to vector<1x128xf32>
      %66 = arith.mulf %59, %65 : vector<1x128xf32>
      %cst_24 = arith.constant 9.99999974E-5 : f32
      %67 = vector.broadcast %cst_24 : f32 to vector<1x128xf32>
      %68 = arith.addf %66, %67 : vector<1x128xf32>
      %69 = math.sqrt %68 : vector<1x128xf32>
      %cst_25 = arith.constant 1.000000e+00 : f32
      %70 = vector.broadcast %cst_25 : f32 to vector<1x128xf32>
      %71 = arith.subf %70, %64 : vector<1x128xf32>
      %cst_26 = arith.constant 0.000000e+00 : f32
      %72 = vector.broadcast %cst_26 : f32 to vector<1x128xf32>
      %73 = arith.maximumf %71, %72 : vector<1x128xf32>
      %74 = vector.shape_cast %73 : vector<1x128xf32> to vector<1x1x128xf32>
      %cst_27 = arith.constant dense<0.000000e+00> : vector<1xf32>
      %75 = vector.multi_reduction <add>, %74, %cst_27 [1, 2] : vector<1x1x128xf32> to vector<1xf32>
      %76 = vector.shape_cast %75 : vector<1xf32> to vector<1x1x1xf32>
      %77 = vector.extract %76[0, 0, 0] : f32 from vector<1x1x1xf32>
      %cst_28 = arith.constant 1.000000e+00 : f32
      %78 = vector.broadcast %cst_28 : f32 to vector<1x128xf32>
      %79 = arith.subf %78, %69 : vector<1x128xf32>
      %cst_29 = arith.constant 0.000000e+00 : f32
      %80 = vector.broadcast %cst_29 : f32 to vector<1x128xf32>
      %81 = arith.maximumf %79, %80 : vector<1x128xf32>
      %82 = vector.shape_cast %81 : vector<1x128xf32> to vector<1x1x128xf32>
      %cst_30 = arith.constant dense<0.000000e+00> : vector<1xf32>
      %83 = vector.multi_reduction <add>, %82, %cst_30 [1, 2] : vector<1x1x128xf32> to vector<1xf32>
      %84 = vector.shape_cast %83 : vector<1xf32> to vector<1x1x1xf32>
      %85 = vector.extract %84[0, 0, 0] : f32 from vector<1x1x1xf32>
      %86 = arith.addf %77, %85 : f32
      %c0_31 = arith.constant 0 : index
      %c0_32 = arith.constant 0 : index
      %c0_33 = arith.constant 0 : index
      %87 = vector.load %arg7[%c0_31, %c0_32, %c0_33] : memref<1x8x128xf32, #tpu.memory_space<vmem>>, vector<1x8x128xf32>
      %88 = vector.shape_cast %87 : vector<1x8x128xf32> to vector<8x128xf32>
      %c0_i32_34 = arith.constant 0 : i32
      %89 = vector.broadcast %c0_i32_34 : i32 to vector<8x128xi32>
      %90 = arith.cmpi eq, %37, %89 : vector<8x128xi32>
      %c1_i32 = arith.constant 1 : i32
      %91 = vector.broadcast %c1_i32 : i32 to vector<8x128xi32>
      %92 = arith.cmpi eq, %37, %91 : vector<8x128xi32>
      %93 = vector.broadcast %86 : f32 to vector<8x128xf32>
      %94 = arith.select %92, %93, %88 : vector<8x128xi1>, vector<8x128xf32>
      %95 = vector.broadcast %53 : f32 to vector<8x128xf32>
      %96 = arith.select %90, %95, %94 : vector<8x128xi1>, vector<8x128xf32>
      %c0_35 = arith.constant 0 : index
      %c0_36 = arith.constant 0 : index
      %c0_37 = arith.constant 0 : index
      %97 = vector.load %arg7[%c0_35, %c0_36, %c0_37] : memref<1x8x128xf32, #tpu.memory_space<vmem>>, vector<1x8x128xf32>
      %98 = vector.shape_cast %97 : vector<1x8x128xf32> to vector<8x128xf32>
      %99 = vector.shape_cast %96 : vector<8x128xf32> to vector<1x8x128xf32>
      tpu.vector_store %arg7[%c0_35, %c0_36, %c0_37], %99 {strides = array<i32>} : memref<1x8x128xf32, #tpu.memory_space<vmem>>, vector<1x8x128xf32>,
    } else {
    }
    return
  }
  func.func @transform_0(%arg0: i32, %arg1: memref<1xi32, #tpu.memory_space<smem>>, %arg2: memref<1xi32, #tpu.memory_space<smem>>) -> (i32, i32) {
    %0 = arith.index_cast %arg0 : i32 to index
    %1 = memref.load %arg1[%0] : memref<1xi32, #tpu.memory_space<smem>>
    %c0_i32 = arith.constant 0 : i32
    %c0_i32_0 = arith.constant 0 : i32
    return %c0_i32, %1 : i32, i32
  }
  func.func @transform_1(%arg0: i32, %arg1: memref<1xi32, #tpu.memory_space<smem>>, %arg2: memref<1xi32, #tpu.memory_space<smem>>) -> (i32, i32) {
    %0 = arith.index_cast %arg0 : i32 to index
    %1 = memref.load %arg2[%0] : memref<1xi32, #tpu.memory_space<smem>>
    %c0_i32 = arith.constant 0 : i32
    %c0_i32_0 = arith.constant 0 : i32
    return %c0_i32, %1 : i32, i32
  }
  func.func @transform_2(%arg0: i32, %arg1: memref<1xi32, #tpu.memory_space<smem>>, %arg2: memref<1xi32, #tpu.memory_space<smem>>) -> (i32, i32) {
    %0 = arith.index_cast %arg0 : i32 to index
    %1 = memref.load %arg1[%0] : memref<1xi32, #tpu.memory_space<smem>>
    %c0_i32 = arith.constant 0 : i32
    %c0_i32_0 = arith.constant 0 : i32
    return %c0_i32, %1 : i32, i32
  }
  func.func @transform_3(%arg0: i32, %arg1: memref<1xi32, #tpu.memory_space<smem>>, %arg2: memref<1xi32, #tpu.memory_space<smem>>) -> (i32, i32) {
    %0 = arith.index_cast %arg0 : i32 to index
    %1 = memref.load %arg2[%0] : memref<1xi32, #tpu.memory_space<smem>>
    %c0_i32 = arith.constant 0 : i32
    %c0_i32_0 = arith.constant 0 : i32
    return %c0_i32, %1 : i32, i32
  }
  func.func @transform_4(%arg0: i32, %arg1: memref<1xi32, #tpu.memory_space<smem>>, %arg2: memref<1xi32, #tpu.memory_space<smem>>) -> (i32, i32, i32) {
    %c0_i32 = arith.constant 0 : i32
    %c0_i32_0 = arith.constant 0 : i32
    %c0_i32_1 = arith.constant 0 : i32
    return %arg0, %c0_i32, %c0_i32_0 : i32, i32, i32
  }
}

</mosaic_0001>

<llo_original>
// kernel: tpu_custom_call.1
$region0: #{tpu_custom_call.1}
  #allocation0 [shape = 'u32[]', space=smem, size = 0x4, offset = 0x4, fixed_abs, tag = 'smem constant byte address 0x4 - core index']
  #allocation1 [shape = 'u32[72,128]{1,0:T(1,128)}', space=vmem, size = 0x9000, scoped, tag = 'internal scratch']
  #allocation2 [shape = 's32[1]{0}', space=sflag, size = 0x4, scoped, tag = 'scoped memory for tpu_custom_call.1']
  #allocation3 [shape = 's32[1]{0:T(128)S(6)}', space=smem, size = 0x200, scoped, tag = 'prefetched SMEM operand 0']
  #allocation4 [shape = 's32[1]{0:T(128)S(6)}', space=smem, size = 0x200, scoped, tag = 'prefetched SMEM operand 1']
  %s0 = inlined_call_operand.<no memory space> [shape: s32[1], index: 0, kind: input, shape index: {}]
  %s1 = inlined_call_operand.<no memory space> [shape: s32[1], index: 1, kind: input, shape index: {}]
  %s2 = inlined_call_operand.hbm [shape: f32[8,128], index: 2, kind: input, shape index: {}]
  %s3 = inlined_call_operand.hbm [shape: f32[8,128], index: 3, kind: input, shape index: {}]
  %s4 = inlined_call_operand.hbm [shape: f32[8,128], index: 4, kind: input, shape index: {}]
  %s5 = inlined_call_operand.hbm [shape: f32[8,128], index: 5, kind: input, shape index: {}]
  %s6 = inlined_call_operand.hbm [shape: f32[1,8,128], index: 6, kind: output, shape index: {}]
  %s7 = sld [smem:[#allocation0]]
  $region46: #{tpu_custom_call.1} parent=0
    _
  %s9 = ssub.s32 1, %s7
  %s10 = scalar_select 0, %s9, %s7
  %11 = sst [smem:[#allocation3]] %s0
  %12 = sst [smem:[#allocation4]] %s1
  $region1: #{tpu_custom_call.1} parent=0
    #allocation5 [shape = 'u8[4096]{0}', space=vmem, size = 0x1000, scoped, tag = 'input window, operand 2, single buffered']
    #allocation6 [shape = 's32[1]{0}', space=sflag, size = 0x4, scoped, tag = 'scoped memory for tpu_custom_call.1']
    #allocation7 [shape = 's32[1]{0}', space=sflag, size = 0x4, scoped, tag = 'scoped memory for tpu_custom_call.1']
    #allocation8 [shape = 'u8[4096]{0}', space=vmem, size = 0x1000, scoped, tag = 'input window, operand 3, single buffered']
    #allocation9 [shape = 's32[1]{0}', space=sflag, size = 0x4, scoped, tag = 'scoped memory for tpu_custom_call.1']
    #allocation10 [shape = 'u8[4096]{0}', space=vmem, size = 0x1000, scoped, tag = 'input window, operand 4, single buffered']
    #allocation11 [shape = 'u8[4096]{0}', space=vmem, size = 0x1000, scoped, tag = 'input window, operand 5, single buffered']
    #allocation12 [shape = 's32[1]{0}', space=sflag, size = 0x4, scoped, tag = 'scoped memory for tpu_custom_call.1']
    #allocation13 [shape = 'u8[4096]{0}', space=vmem, size = 0x1000, scoped, tag = 'output window, operand 0, single buffered']
    %13 = vsyncpa [#allocation6], 0
    %14 = vsyncpa [#allocation9], 0
    %15 = vsyncpa [#allocation12], 0
    %16 = vsyncpa [#allocation7], 0
    // Predicated region
    $region2: #{tpu_custom_call.1} parent=1 // pred_check
      _
    $region3: #{tpu_custom_call.1} parent=1 // pred_check_branch
      %18 = sbr.rel (0) target = $region5
    $region4: #{tpu_custom_call.1} parent=1 // pred_region
      %s19 = sld [smem:[#allocation3]]
      %21 = vsyncadd [#allocation6], 0
      %s22 = smul.addr %s19, 8
      %s23 = scalar_lea.hbm %s2, %s22
      %s25 = sshll.u32 %s23, 4
      %s26 = int_to_ptr.hbm [resolvable:$true] %s25
      %s27 = sshll.u32 [#allocation5], 4
      %s28 = int_to_ptr.vmem [resolvable:$true] %s27
      %30 = dma.hbm_to_vmem [thread:$0]  %s26, 128, %s28, [#allocation6]
    $region5: #{tpu_custom_call.1} parent=1 // pred_fallthru
      _
    // Predicated region
    $region6: #{tpu_custom_call.1} parent=1 // pred_check
      _
    $region7: #{tpu_custom_call.1} parent=1 // pred_check_branch
      %32 = sbr.rel (0) target = $region9
    $region8: #{tpu_custom_call.1} parent=1 // pred_region
      %s33 = sld [smem:[#allocation4]]
      %35 = vsyncadd [#allocation9], 0
      %s36 = smul.addr %s33, 8
      %s37 = scalar_lea.hbm %s3, %s36
      %s39 = sshll.u32 %s37, 4
      %s40 = int_to_ptr.hbm [resolvable:$true] %s39
      %s41 = sshll.u32 [#allocation8], 4
      %s42 = int_to_ptr.vmem [resolvable:$true] %s41
      %44 = dma.hbm_to_vmem [thread:$0]  %s40, 128, %s42, [#allocation9]
    $region9: #{tpu_custom_call.1} parent=1 // pred_fallthru
      _
    // Predicated region
    $region10: #{tpu_custom_call.1} parent=1 // pred_check
      _
    $region11: #{tpu_custom_call.1} parent=1 // pred_check_branch
      %46 = sbr.rel (0) target = $region13
    $region12: #{tpu_custom_call.1} parent=1 // pred_region
      %s47 = sld [smem:[#allocation3]]
      %49 = vsyncadd [#allocation9], 0
      %s50 = smul.addr %s47, 8
      %s51 = scalar_lea.hbm %s4, %s50
      %s53 = sshll.u32 %s51, 4
      %s54 = int_to_ptr.hbm [resolvable:$true] %s53
      %s55 = sshll.u32 [#allocation10], 4
      %s56 = int_to_ptr.vmem [resolvable:$true] %s55
      %58 = dma.hbm_to_vmem [thread:$0]  %s54, 128, %s56, [#allocation9]
    $region13: #{tpu_custom_call.1} parent=1 // pred_fallthru
      _
    // Predicated region
    $region14: #{tpu_custom_call.1} parent=1 // pred_check
      _
    $region15: #{tpu_custom_call.1} parent=1 // pred_check_branch
      %60 = sbr.rel (0) target = $region17
    $region16: #{tpu_custom_call.1} parent=1 // pred_region
      %s61 = sld [smem:[#allocation4]]
      %63 = vsyncadd [#allocation12], 0
      %s64 = smul.addr %s61, 8
      %s65 = scalar_lea.hbm %s5, %s64
      %s67 = sshll.u32 %s65, 4
      %s68 = int_to_ptr.hbm [resolvable:$true] %s67
      %s69 = sshll.u32 [#allocation11], 4
      %s70 = int_to_ptr.vmem [resolvable:$true] %s69
      %72 = dma.hbm_to_vmem [thread:$0]  %s68, 128, %s70, [#allocation12]
    $region17: #{tpu_custom_call.1} parent=1 // pred_fallthru
      _
    // Predicated region
    $region18: #{tpu_custom_call.1} parent=1 // pred_check
      _
    $region19: #{tpu_custom_call.1} parent=1 // pred_check_branch
      %74 = sbr.rel (0) target = $region21
    $region20: #{tpu_custom_call.1} parent=1 // pred_region
      %76 = dma.done [#allocation6], 128
    $region21: #{tpu_custom_call.1} parent=1 // pred_fallthru
      _
    // Predicated region
    $region22: #{tpu_custom_call.1} parent=1 // pred_check
      _
    $region23: #{tpu_custom_call.1} parent=1 // pred_check_branch
      %78 = sbr.rel (0) target = $region25
    $region24: #{tpu_custom_call.1} parent=1 // pred_region
      %80 = dma.done [#allocation9], 128
    $region25: #{tpu_custom_call.1} parent=1 // pred_fallthru
      _
    // Predicated region
    $region26: #{tpu_custom_call.1} parent=1 // pred_check
      _
    $region27: #{tpu_custom_call.1} parent=1 // pred_check_branch
      %82 = sbr.rel (0) target = $region29
    $region28: #{tpu_custom_call.1} parent=1 // pred_region
      %84 = dma.done [#allocation9], 128
    $region29: #{tpu_custom_call.1} parent=1 // pred_fallthru
      _
    // Predicated region
    $region30: #{tpu_custom_call.1} parent=1 // pred_check
      _
    $region31: #{tpu_custom_call.1} parent=1 // pred_check_branch
      %86 = sbr.rel (0) target = $region33
    $region32: #{tpu_custom_call.1} parent=1 // pred_region
      %88 = dma.done [#allocation12], 128
    $region33: #{tpu_custom_call.1} parent=1 // pred_fallthru
      _
    %s89 = sld [smem:[#allocation3]]
    %s90 = sld [smem:[#allocation4]]
    %s91 = sld [smem:[#allocation3]]
    %s92 = sld [smem:[#allocation4]]
    %s94 = sld [smem:[#allocation3]]
    %s95 = sld [smem:[#allocation4]]
    %p96 = scmp.eq.s32.totalorder %s94, %s95
    %v97 = vld [vmem:[#allocation5] sm:$0xff]
    %v98 = vld [vmem:[#allocation8] sm:$0xff]
    %v99 = vld [vmem:[#allocation10] sm:$0xff]
    %v100 = vld [vmem:[#allocation11] sm:$0xff]
    %v101 = vlaneseq
    %v102 = vshrl.u32 %v101, 7
    %v103 = vadd.s32 %v102, 8
    %v104 = vadd.s32 %v102, 16
    %v105 = vadd.s32 %v102, 24
    %v106 = vadd.s32 %v102, 32
    %v107 = vadd.s32 %v102, 40
    %v108 = vadd.s32 %v102, 48
    %v109 = vadd.s32 %v102, 56
    %v110 = vadd.s32 %v102, 64
    %v111 = vadd.s32 %v102, 72
    %v112 = vadd.s32 %v102, 80
    %v113 = vadd.s32 %v102, 88
    %v114 = vadd.s32 %v102, 96
    %v115 = vadd.s32 %v102, 104
    %v116 = vadd.s32 %v102, 112
    %v117 = vadd.s32 %v102, 120
    %v118 = vlaneseq
    %v119 = vand.u32 %v118, 127
    %vm120 = vcmp.eq.s32.totalorder %v102, %v119
    %vm121 = vcmp.eq.s32.totalorder %v103, %v119
    %vm122 = vcmp.eq.s32.totalorder %v104, %v119
    %vm123 = vcmp.eq.s32.totalorder %v105, %v119
    %vm124 = vcmp.eq.s32.totalorder %v106, %v119
    %vm125 = vcmp.eq.s32.totalorder %v107, %v119
    %vm126 = vcmp.eq.s32.totalorder %v108, %v119
    %vm127 = vcmp.eq.s32.totalorder %v109, %v119
    %vm128 = vcmp.eq.s32.totalorder %v110, %v119
    %vm129 = vcmp.eq.s32.totalorder %v111, %v119
    %vm130 = vcmp.eq.s32.totalorder %v112, %v119
    %vm131 = vcmp.eq.s32.totalorder %v113, %v119
    %vm132 = vcmp.eq.s32.totalorder %v114, %v119
    %vm133 = vcmp.eq.s32.totalorder %v115, %v119
    %vm134 = vcmp.eq.s32.totalorder %v116, %v119
    %vm135 = vcmp.eq.s32.totalorder %v117, %v119
    %s136 = scalar_select %p96, 1, 0
    %v137 = vstv %s136
    %vm138 = vcmp.eq.s32.totalorder %v137, 1
    %vm139 = vmand %vm138, %vm120
    %vm140 = vmand %vm138, %vm121
    %vm141 = vmand %vm138, %vm122
    %vm142 = vmand %vm138, %vm123
    %vm143 = vmand %vm138, %vm124
    %vm144 = vmand %vm138, %vm125
    %vm145 = vmand %vm138, %vm126
    %vm146 = vmand %vm138, %vm127
    %vm147 = vmand %vm138, %vm128
    %vm148 = vmand %vm138, %vm129
    %vm149 = vmand %vm138, %vm130
    %vm150 = vmand %vm138, %vm131
    %vm151 = vmand %vm138, %vm132
    %vm152 = vmand %vm138, %vm133
    %vm153 = vmand %vm138, %vm134
    %vm154 = vmand %vm138, %vm135
    %s155 = scalar_select %p96, 1.0, 2.0
    %v156 = vpack.c.bf16 %v97, %v97
    %v157 = vpack.c.bf16 %v98, %v98
    %158 = vxpose.xlu0.c.b16.start [1/8] %v156, 128
    %159 = vxpose.xlu0.c.b16.cont [2/8] 0, 128
    %160 = vxpose.xlu0.c.b16.cont [3/8] 0, 128
    %161 = vxpose.xlu0.c.b16.cont [4/8] 0, 128
    %162 = vxpose.xlu0.c.b16.cont [5/8] 0, 128
    %163 = vxpose.xlu0.c.b16.cont [6/8] 0, 128
    %164 = vxpose.xlu0.c.b16.cont [7/8] 0, 128
    %165 = vxpose.xlu0.c.b16.end [8/8] 0, 128
    %v166 = vpop.trf.xlu0
    %v167 = vpop.trf.xlu0
    %v168 = vpop.trf.xlu0
    %v169 = vpop.trf.xlu0
    %v170 = vpop.trf.xlu0
    %v171 = vpop.trf.xlu0
    %v172 = vpop.trf.xlu0
    %v173 = vpop.trf.xlu0
    %vm174 = vcmask 64512
    %v176 = vsel %vm174, %v166, 0
    %v179 = vsel %vm174, %v167, 0
    %v182 = vsel %vm174, %v168, 0
    %v185 = vsel %vm174, %v169, 0
    %v188 = vsel %vm174, %v170, 0
    %v191 = vsel %vm174, %v171, 0
    %v194 = vsel %vm174, %v172, 0
    %v197 = vsel %vm174, %v173, 0
    %vm199 = vcmask 1043456
    %v201 = vsel %vm199, %v157, 0
    %203 = vmatpush.bf16.msra.mxu0 0
    %204 = vmatpush.bf16.msra.mxu0 0
    %205 = vmatpush.bf16.msra.mxu0 0
    %206 = vmatpush.bf16.msra.mxu0 0
    %207 = vmatpush.bf16.msra.mxu0 0
    %208 = vmatpush.bf16.msra.mxu0 0
    %209 = vmatpush.bf16.msra.mxu0 0
    %210 = vmatpush.bf16.msra.mxu0 %v201
    %211 = vmatmul.bf16.gmra.mxu0 %v176
    %v212 = vpop.f32.mrf.mxu0
    %v213 = vadd.f32 0.0, %v212
    %v214 = vpop.f32.mrf.mxu0
    %v215 = vadd.f32 0.0, %v214
    %216 = vmatmul.bf16.gmra.mxu0 %v179
    %v217 = vpop.f32.mrf.mxu0
    %v218 = vadd.f32 0.0, %v217
    %v219 = vpop.f32.mrf.mxu0
    %v220 = vadd.f32 0.0, %v219
    %221 = vmatmul.bf16.gmra.mxu0 %v182
    %v222 = vpop.f32.mrf.mxu0
    %v223 = vadd.f32 0.0, %v222
    %v224 = vpop.f32.mrf.mxu0
    %v225 = vadd.f32 0.0, %v224
    %226 = vmatmul.bf16.gmra.mxu0 %v185
    %v227 = vpop.f32.mrf.mxu0
    %v228 = vadd.f32 0.0, %v227
    %v229 = vpop.f32.mrf.mxu0
    %v230 = vadd.f32 0.0, %v229
    %231 = vmatmul.bf16.gmra.mxu0 %v188
    %v232 = vpop.f32.mrf.mxu0
    %v233 = vadd.f32 0.0, %v232
    %v234 = vpop.f32.mrf.mxu0
    %v235 = vadd.f32 0.0, %v234
    %236 = vmatmul.bf16.gmra.mxu0 %v191
    %v237 = vpop.f32.mrf.mxu0
    %v238 = vadd.f32 0.0, %v237
    %v239 = vpop.f32.mrf.mxu0
    %v240 = vadd.f32 0.0, %v239
    %241 = vmatmul.bf16.gmra.mxu0 %v194
    %v242 = vpop.f32.mrf.mxu0
    %v243 = vadd.f32 0.0, %v242
    %v244 = vpop.f32.mrf.mxu0
    %v245 = vadd.f32 0.0, %v244
    %246 = vmatmul.bf16.gmra.mxu0 %v197
    %v247 = vpop.f32.mrf.mxu0
    %v248 = vadd.f32 0.0, %v247
    %v249 = vpop.f32.mrf.mxu0
    %v250 = vadd.f32 0.0, %v249
    %251 = vdwg.mxu0
    %v252 = vsel %vm139, 0.0, %v213
    %v253 = vsel %vm140, 0.0, %v215
    %v254 = vsel %vm141, 0.0, %v218
    %v255 = vsel %vm142, 0.0, %v220
    %v256 = vsel %vm143, 0.0, %v223
    %v257 = vsel %vm144, 0.0, %v225
    %v258 = vsel %vm145, 0.0, %v228
    %v259 = vsel %vm146, 0.0, %v230
    %v260 = vsel %vm147, 0.0, %v233
    %v261 = vsel %vm148, 0.0, %v235
    %v262 = vsel %vm149, 0.0, %v238
    %v263 = vsel %vm150, 0.0, %v240
    %v264 = vsel %vm151, 0.0, %v243
    %v265 = vsel %vm152, 0.0, %v245
    %v266 = vsel %vm153, 0.0, %v248
    %v267 = vsel %vm154, 0.0, %v250
    %v268 = vmul.f32 %v252, %v252
    %v269 = vmul.f32 %v253, %v253
    %v270 = vmul.f32 %v254, %v254
    %v271 = vmul.f32 %v255, %v255
    %v272 = vmul.f32 %v256, %v256
    %v273 = vmul.f32 %v257, %v257
    %v274 = vmul.f32 %v258, %v258
    %v275 = vmul.f32 %v259, %v259
    %v276 = vmul.f32 %v260, %v260
    %v277 = vmul.f32 %v261, %v261
    %v278 = vmul.f32 %v262, %v262
    %v279 = vmul.f32 %v263, %v263
    %v280 = vmul.f32 %v264, %v264
    %v281 = vmul.f32 %v265, %v265
    %v282 = vmul.f32 %v266, %v266
    %v283 = vmul.f32 %v267, %v267
    %v284 = vadd.f32 %v268, %v269
    %v285 = vadd.f32 %v284, %v270
    %v286 = vadd.f32 %v285, %v271
    %v287 = vadd.f32 %v286, %v272
    %v288 = vadd.f32 %v287, %v273
    %v289 = vadd.f32 %v288, %v274
    %v290 = vadd.f32 %v289, %v275
    %v291 = vadd.f32 %v290, %v276
    %v292 = vadd.f32 %v291, %v277
    %v293 = vadd.f32 %v292, %v278
    %v294 = vadd.f32 %v293, %v279
    %v295 = vadd.f32 %v294, %v280
    %v296 = vadd.f32 %v295, %v281
    %v297 = vadd.f32 %v296, %v282
    %v298 = vadd.f32 %v297, %v283
    %299 = vadd.xlane.f32.xlu0 %v298
    %v300 = vpop.xlane.xlu0 %299
    %v301 = vrot.slane %v300, 4
    %v302 = vadd.f32 %v300, %v301
    %v303 = vrot.slane %v302, 2
    %v304 = vadd.f32 %v302, %v303
    %v305 = vrot.slane %v304, 1
    %v306 = vadd.f32 %v304, %v305
    %s307 = vtos %v306
    %v308 = vpack.c.bf16 %v99, %v99
    %v309 = vpack.c.bf16 %v100, %v100
    %310 = vxpose.xlu0.c.b16.start [1/8] %v308, 128
    %311 = vxpose.xlu0.c.b16.cont [2/8] 0, 128
    %312 = vxpose.xlu0.c.b16.cont [3/8] 0, 128
    %313 = vxpose.xlu0.c.b16.cont [4/8] 0, 128
    %314 = vxpose.xlu0.c.b16.cont [5/8] 0, 128
    %315 = vxpose.xlu0.c.b16.cont [6/8] 0, 128
    %316 = vxpose.xlu0.c.b16.cont [7/8] 0, 128
    %317 = vxpose.xlu0.c.b16.end [8/8] 0, 128
    %v318 = vpop.trf.xlu0
    %v319 = vpop.trf.xlu0
    %v320 = vpop.trf.xlu0
    %v321 = vpop.trf.xlu0
    %v322 = vpop.trf.xlu0
    %v323 = vpop.trf.xlu0
    %v324 = vpop.trf.xlu0
    %v325 = vpop.trf.xlu0
    %v327 = vsel %vm174, %v318, 0
    %v330 = vsel %vm174, %v319, 0
    %v333 = vsel %vm174, %v320, 0
    %v336 = vsel %vm174, %v321, 0
    %v339 = vsel %vm174, %v322, 0
    %v342 = vsel %vm174, %v323, 0
    %v345 = vsel %vm174, %v324, 0
    %v348 = vsel %vm174, %v325, 0
    %v351 = vsel %vm199, %v309, 0
    %353 = vmatpush.bf16.msra.mxu0 0
    %354 = vmatpush.bf16.msra.mxu0 0
    %355 = vmatpush.bf16.msra.mxu0 0
    %356 = vmatpush.bf16.msra.mxu0 0
    %357 = vmatpush.bf16.msra.mxu0 0
    %358 = vmatpush.bf16.msra.mxu0 0
    %359 = vmatpush.bf16.msra.mxu0 0
    %360 = vmatpush.bf16.msra.mxu0 %v351
    %361 = vmatmul.bf16.gmra.mxu0 %v327
    %v362 = vpop.f32.mrf.mxu0
    %v363 = vadd.f32 0.0, %v362
    %v364 = vpop.f32.mrf.mxu0
    %v365 = vadd.f32 0.0, %v364
    %366 = vmatmul.bf16.gmra.mxu0 %v330
    %v367 = vpop.f32.mrf.mxu0
    %v368 = vadd.f32 0.0, %v367
    %v369 = vpop.f32.mrf.mxu0
    %v370 = vadd.f32 0.0, %v369
    %371 = vmatmul.bf16.gmra.mxu0 %v333
    %v372 = vpop.f32.mrf.mxu0
    %v373 = vadd.f32 0.0, %v372
    %v374 = vpop.f32.mrf.mxu0
    %v375 = vadd.f32 0.0, %v374
    %376 = vmatmul.bf16.gmra.mxu0 %v336
    %v377 = vpop.f32.mrf.mxu0
    %v378 = vadd.f32 0.0, %v377
    %v379 = vpop.f32.mrf.mxu0
    %v380 = vadd.f32 0.0, %v379
    %381 = vmatmul.bf16.gmra.mxu0 %v339
    %v382 = vpop.f32.mrf.mxu0
    %v383 = vadd.f32 0.0, %v382
    %v384 = vpop.f32.mrf.mxu0
    %v385 = vadd.f32 0.0, %v384
    %386 = vmatmul.bf16.gmra.mxu0 %v342
    %v387 = vpop.f32.mrf.mxu0
    %v388 = vadd.f32 0.0, %v387
    %v389 = vpop.f32.mrf.mxu0
    %v390 = vadd.f32 0.0, %v389
    %391 = vmatmul.bf16.gmra.mxu0 %v345
    %v392 = vpop.f32.mrf.mxu0
    %v393 = vadd.f32 0.0, %v392
    %v394 = vpop.f32.mrf.mxu0
    %v395 = vadd.f32 0.0, %v394
    %396 = vmatmul.bf16.gmra.mxu0 %v348
    %v397 = vpop.f32.mrf.mxu0
    %v398 = vadd.f32 0.0, %v397
    %v399 = vpop.f32.mrf.mxu0
    %v400 = vadd.f32 0.0, %v399
    %401 = vdwg.mxu0
    %v402 = vsel %vm139, 0.0, %v363
    %v403 = vsel %vm140, 0.0, %v365
    %v404 = vsel %vm141, 0.0, %v368
    %v405 = vsel %vm142, 0.0, %v370
    %v406 = vsel %vm143, 0.0, %v373
    %v407 = vsel %vm144, 0.0, %v375
    %v408 = vsel %vm145, 0.0, %v378
    %v409 = vsel %vm146, 0.0, %v380
    %v410 = vsel %vm147, 0.0, %v383
    %v411 = vsel %vm148, 0.0, %v385
    %v412 = vsel %vm149, 0.0, %v388
    %v413 = vsel %vm150, 0.0, %v390
    %v414 = vsel %vm151, 0.0, %v393
    %v415 = vsel %vm152, 0.0, %v395
    %v416 = vsel %vm153, 0.0, %v398
    %v417 = vsel %vm154, 0.0, %v400
    %v418 = vmul.f32 %v402, %v402
    %v419 = vmul.f32 %v403, %v403
    %v420 = vmul.f32 %v404, %v404
    %v421 = vmul.f32 %v405, %v405
    %v422 = vmul.f32 %v406, %v406
    %v423 = vmul.f32 %v407, %v407
    %v424 = vmul.f32 %v408, %v408
    %v425 = vmul.f32 %v409, %v409
    %v426 = vmul.f32 %v410, %v410
    %v427 = vmul.f32 %v411, %v411
    %v428 = vmul.f32 %v412, %v412
    %v429 = vmul.f32 %v413, %v413
    %v430 = vmul.f32 %v414, %v414
    %v431 = vmul.f32 %v415, %v415
    %v432 = vmul.f32 %v416, %v416
    %v433 = vmul.f32 %v417, %v417
    %v434 = vadd.f32 %v418, %v419
    %v435 = vadd.f32 %v434, %v420
    %v436 = vadd.f32 %v435, %v421
    %v437 = vadd.f32 %v436, %v422
    %v438 = vadd.f32 %v437, %v423
    %v439 = vadd.f32 %v438, %v424
    %v440 = vadd.f32 %v439, %v425
    %v441 = vadd.f32 %v440, %v426
    %v442 = vadd.f32 %v441, %v427
    %v443 = vadd.f32 %v442, %v428
    %v444 = vadd.f32 %v443, %v429
    %v445 = vadd.f32 %v444, %v430
    %v446 = vadd.f32 %v445, %v431
    %v447 = vadd.f32 %v446, %v432
    %v448 = vadd.f32 %v447, %v433
    %449 = vadd.xlane.f32.xlu0 %v448
    %v450 = vpop.xlane.xlu0 %449
    %v451 = vrot.slane %v450, 4
    %v452 = vadd.f32 %v450, %v451
    %v453 = vrot.slane %v452, 2
    %v454 = vadd.f32 %v452, %v453
    %v455 = vrot.slane %v454, 1
    %v456 = vadd.f32 %v454, %v455
    %s457 = vtos %v456
    %s458 = sadd.f32 %s307, %s457
    %s459 = smul.f32 %s458, %s155
    %vm460 = vcmp.eq.s32.totalorder %v102, 2
    %v461 = vstv %s459
    %v462 = vsel %vm460, %v461, 0.0
    %463 = vst [vmem:[#allocation13] sm:$0xff] %v462
    // Predicated region
    $region34: #{tpu_custom_call.1} parent=1 // pred_check
      %p464 = pneg %p96
    $region35: #{tpu_custom_call.1} parent=1 // pred_check_branch
      %466 = sbr.rel (%p464) target = $region37
    $region36: #{tpu_custom_call.1} parent=1 // pred_region
      %v467 = vsub.f32 %v97, %v99
      %v468 = vmul.f32 %v467, %v467
      %469 = vadd.xlane.f32.xlu0 %v468
      %v470 = vpop.xlane.xlu0 %469
      %v471 = vrot.slane %v470, 4
      %v472 = vadd.f32 %v470, %v471
      %v473 = vrot.slane %v472, 2
      %v474 = vadd.f32 %v472, %v473
      %v475 = vrot.slane %v474, 1
      %v476 = vadd.f32 %v474, %v475
      %s477 = vtos %v476
      %v478 = vmul.f32 %v97, %v97
      %v479 = vrot.slane %v478, 4
      %v480 = vadd.f32 %v478, %v479
      %v481 = vrot.slane %v480, 2
      %v482 = vadd.f32 %v480, %v481
      %v483 = vrot.slane %v482, 1
      %v484 = vadd.f32 %v482, %v483
      %v485 = vmul.f32 %v99, %v99
      %v486 = vrot.slane %v485, 4
      %v487 = vadd.f32 %v485, %v486
      %v488 = vrot.slane %v487, 2
      %v489 = vadd.f32 %v487, %v488
      %v490 = vrot.slane %v489, 1
      %v491 = vadd.f32 %v489, %v490
      %v492 = vmul.f32 %v484, 0.14285715
      %v493 = vadd.f32 %v492, 0.0001
      %v494 = vrsqrt.pop %v493
      %v495 = vmul.f32 %v494, %v493
      %v496 = vmul.f32 %v495, %v494
      %v497 = vmul.f32 0.5, %v496
      %v498 = vsub.f32 1.5, %v497
      %v499 = vmul.f32 %v494, %v498
      %v500 = vmul.f32 %v493, %v499
      %vm501 = vcmp.eq.f32.partialorder %v493, inf
      %v502 = vsel %vm501, %v493, %v500
      %vm503 = vcmp.eq.f32.partialorder %v493, 0.0
      %v504 = vand.u32 %v493, 2147483648
      %v505 = vsel %vm503, %v504, %v502
      %v506 = vmul.f32 %v491, 0.14285715
      %v507 = vadd.f32 %v506, 0.0001
      %v508 = vrsqrt.pop %v507
      %v509 = vmul.f32 %v508, %v507
      %v510 = vmul.f32 %v509, %v508
      %v511 = vmul.f32 0.5, %v510
      %v512 = vsub.f32 1.5, %v511
      %v513 = vmul.f32 %v508, %v512
      %v514 = vmul.f32 %v507, %v513
      %vm515 = vcmp.eq.f32.partialorder %v507, inf
      %v516 = vsel %vm515, %v507, %v514
      %vm517 = vcmp.eq.f32.partialorder %v507, 0.0
      %v518 = vand.u32 %v507, 2147483648
      %v519 = vsel %vm517, %v518, %v516
      %v520 = vsub.f32 1.0, %v505
      %v521 = vmax.f32 %v520, 0.0
      %vm522 = vcmask 1040384
      %v523 = vsel %vm522, %v521, 0.0
      %524 = vadd.xlane.f32.xlu0 %v523
      %v525 = vpop.xlane.xlu0 %524
      %v526 = vrot.slane %v525, 4
      %v527 = vadd.f32 %v525, %v526
      %v528 = vrot.slane %v527, 2
      %v529 = vadd.f32 %v527, %v528
      %v530 = vrot.slane %v529, 1
      %v531 = vadd.f32 %v529, %v530
      %s532 = vtos %v531
      %v533 = vsub.f32 1.0, %v519
      %v534 = vmax.f32 %v533, 0.0
      %v535 = vsel %vm522, %v534, 0.0
      %536 = vadd.xlane.f32.xlu0 %v535
      %v537 = vpop.xlane.xlu0 %536
      %v538 = vrot.slane %v537, 4
      %v539 = vadd.f32 %v537, %v538
      %v540 = vrot.slane %v539, 2
      %v541 = vadd.f32 %v539, %v540
      %v542 = vrot.slane %v541, 1
      %v543 = vadd.f32 %v541, %v542
      %s544 = vtos %v543
      %s545 = sadd.f32 %s532, %s544
      %v546 = vld [vmem:[#allocation13] sm:$0xff]
      %vm547 = vcmp.eq.s32.totalorder %v102, 0
      %vm548 = vcmp.eq.s32.totalorder %v102, 1
      %v549 = vstv %s545
      %v550 = vsel %vm548, %v549, %v546
      %v551 = vstv %s477
      %v552 = vsel %vm547, %v551, %v550
      %553 = vst [vmem:[#allocation13] sm:$0xff] %v552
    $region37: #{tpu_custom_call.1} parent=1 // pred_fallthru
      _
    // Predicated region
    $region38: #{tpu_custom_call.1} parent=1 // pred_check
      _
    $region39: #{tpu_custom_call.1} parent=1 // pred_check_branch
      %555 = sbr.rel (0) target = $region41
    $region40: #{tpu_custom_call.1} parent=1 // pred_region
      %557 = vsyncadd [#allocation7], 0
      %s559 = sshll.u32 [#allocation13], 4
      %s560 = int_to_ptr.vmem [resolvable:$true] %s559
      %s561 = sshll.u32 %s6, 4
      %s562 = int_to_ptr.hbm [resolvable:$true] %s561
      %564 = dma.vmem_to_hbm [thread:$0]  %s560, 128, %s562, [#allocation7]
    $region41: #{tpu_custom_call.1} parent=1 // pred_fallthru
      _
    // Predicated region
    $region42: #{tpu_custom_call.1} parent=1 // pred_check
      _
    $region43: #{tpu_custom_call.1} parent=1 // pred_check_branch
      %566 = sbr.rel (0) target = $region45
    $region44: #{tpu_custom_call.1} parent=1 // pred_region
      %568 = dma.done [#allocation7], 128
    $region45: #{tpu_custom_call.1} parent=1 // pred_fallthru
      _
    %569 = vsyncpa [#allocation6], 1
    %570 = vsyncpa [#allocation9], 1
    %571 = vsyncpa [#allocation12], 1
    %572 = vsyncpa [#allocation7], 1

</llo_original>
